<compile_context>
chip_gen: v5e
topology: v5e:2x2
jax: 0.10.0
libtpu: 0.0.40
codegen_flags: <defaults>
</compile_context>

<pallas_src>
import functools

import jax
import jax.numpy as jnp
from jax.experimental import pallas as pl
from jax.experimental.pallas import tpu as pltpu


# ----------------------------------------------------------------------------
# Fused Pallas kernel
# ----------------------------------------------------------------------------
def _vmem_spec():
    return pl.BlockSpec(memory_space=pltpu.MemorySpace.VMEM)


def _make_fused_kernel(n_hidden):
    """Build fused kernel: [x@Wᵀ+b -> LayerNorm -> ReLU] * n_hidden -> packed dual head.

    Ref layout (positional):
      x_ref,
      (wT, b, gamma, beta) * n_hidden,      # per hidden layer
      wT_head, b_head,                      # packed dual head (In, 2*latent)
      out_ref                               # (B, 2*latent)
    """

    def kernel(*refs):
        x_ref = refs[0]
        out_ref = refs[-1]

        h = x_ref[...]                      # load activations once, keep in vregs/VMEM
        idx = 1
        for _ in range(n_hidden):
            wT_ref, b_ref, g_ref, beta_ref = refs[idx:idx + 4]
            idx += 4
            # Linear (MXU, f32 accumulation) + bias
            y = jnp.dot(h, wT_ref[...], preferred_element_type=jnp.float32) + b_ref[...]
            # LayerNorm over last dim (biased variance, eps=1e-5, learned affine)
            mu = jnp.mean(y, axis=-1, keepdims=True)
            var = jnp.mean((y - mu) * (y - mu), axis=-1, keepdims=True)
            y = (y - mu) * jax.lax.rsqrt(var + 1e-5)
            y = y * g_ref[...] + beta_ref[...]
            # ReLU
            h = jnp.maximum(y, 0.0)

        # Packed dual head: one matmul for both mean_z and logvar_z.
        wT_head_ref, b_head_ref = refs[idx], refs[idx + 1]
        out_ref[...] = (
            jnp.dot(h, wT_head_ref[...], preferred_element_type=jnp.float32)
            + b_head_ref[...]
        )

    return kernel


# ----------------------------------------------------------------------------
# Reparameterization trick + parameter construction (glue, plain JAX)
# ----------------------------------------------------------------------------
def reparameterization_trick(mean, logvar, key):
    eps = jax.random.normal(key, mean.shape, dtype=mean.dtype)
    return mean + jnp.exp(0.5 * logvar) * eps


def _sample_weights(params, key):
    """Sample all reparameterized weights/biases (same stream for kernel & ref)."""
    wm, wl = params["wT_mean"], params["wT_logvar"]
    bm, bl = params["b_mean"], params["b_logvar"]
    ws, bs = [], []
    for i in range(len(wm)):
        key, k_w, k_b = jax.random.split(key, 3)
        ws.append(reparameterization_trick(wm[i], wl[i], k_w))   # (In, Out)
        bs.append(reparameterization_trick(bm[i], bl[i], k_b))   # (1, Out)
    return ws, bs


def init_params(key, input_dim, latent_dim, plan, user_input_logvar=-20.0):
    """Matches the module's __init__/initialize_parameters, but stores weights
    pre-transposed (In, Out) so no per-forward transpose is needed."""
    sizes = [input_dim] + list(plan) + [latent_dim]
    wT_mean, wT_logvar, b_mean, b_logvar, norms = [], [], [], [], []

    def kaiming_normal_T(key, in_size, out_size):
        # kaiming_normal_(mode='fan_in', nonlinearity='relu'): std = sqrt(2/fan_in)
        std = jnp.sqrt(2.0 / in_size)
        return (std * jax.random.normal(key, (in_size, out_size),
                                        dtype=jnp.float32)).astype(jnp.float32)

    for li in range(1, len(sizes)):
        in_size, out_size = sizes[li - 1], sizes[li]
        n_heads = 2 if li == len(sizes) - 1 else 1
        for _ in range(n_heads):
            key, wk = jax.random.split(key)
            wT_mean.append(kaiming_normal_T(wk, in_size, out_size))
            wT_logvar.append(
                jnp.full((in_size, out_size), user_input_logvar, jnp.float32))
            b_mean.append(jnp.zeros((1, out_size), jnp.float32))
            b_logvar.append(
                jnp.full((1, out_size), user_input_logvar, jnp.float32))
        if li != len(sizes) - 1:
            norms.append((jnp.ones((1, out_size), jnp.float32),    # LN weight
                          jnp.zeros((1, out_size), jnp.float32)))  # LN bias
    return dict(wT_mean=wT_mean, wT_logvar=wT_logvar,
                b_mean=b_mean, b_logvar=b_logvar, norms=norms)


# ----------------------------------------------------------------------------
# Forward: one jit, one pallas_call
# ----------------------------------------------------------------------------
@jax.jit
def stochastic_recognition_forward(params, x, key):
    """Mirrors Stochastic_Recognition_NN.forward. Returns (mean_z, logvar_z)."""
    # torch.flatten(x, start_dim=1)
    x = x.reshape(x.shape[0], -1).astype(jnp.float32)
    B = x.shape[0]
    latent_dim = params["b_mean"][-1].shape[-1]
    n_hidden = len(params["wT_mean"]) - 2

    # Reparameterization sampling (tiny elementwise ops, fused by XLA).
    ws, bs = _sample_weights(params, key)

    # Pack the two output heads into a single lane-denser matmul.
    w_head = jnp.concatenate([ws[-2], ws[-1]], axis=1)   # (In, 2*latent)
    b_head = jnp.concatenate([bs[-2], bs[-1]], axis=1)   # (1, 2*latent)

    kernel_args = [x]
    for i in range(n_hidden):
        gamma, beta = params["norms"][i]
        kernel_args += [ws[i], bs[i], gamma, beta]
    kernel_args += [w_head, b_head]

    packed = pl.pallas_call(
        _make_fused_kernel(n_hidden),
        out_shape=jax.ShapeDtypeStruct((B, 2 * latent_dim), jnp.float32),
        in_specs=[_vmem_spec()] * len(kernel_args),
        out_specs=_vmem_spec(),
    )(*kernel_args)

    mean_z = packed[:, :latent_dim]
    logvar_z = packed[:, latent_dim:]
    return mean_z, logvar_z


# ----------------------------------------------------------------------------
# Reference (pure JAX) for sanity check — identical RNG stream
# ----------------------------------------------------------------------------
def _ref_forward(params, x, key):
    x = x.reshape(x.shape[0], -1).astype(jnp.float32)
    ws, bs = _sample_weights(params, key)
    n_hidden = len(ws) - 2
    for i in range(n_hidden):
        y = x @ ws[i] + bs[i]
        mu = jnp.mean(y, axis=-1, keepdims=True)
        var = jnp.mean((y - mu) ** 2, axis=-1, keepdims=True)
        y = (y - mu) / jnp.sqrt(var + 1e-5)
        gamma, beta = params["norms"][i]
        y = y * gamma + beta
        x = jnp.maximum(y, 0.0)
    mean_z = x @ ws[-2] + bs[-2]
    logvar_z = x @ ws[-1] + bs[-1]
    return mean_z, logvar_z


# ----------------------------------------------------------------------------
if __name__ == "__main__":
    key = jax.random.PRNGKey(0)
    key, k_init, k_x, k_fwd = jax.random.split(key, 4)

    # Small shapes consistent with the module: x of shape (batch, 4, 16),
    # flattened to input_dim = 64; plan = [32, 32]; latent_dim = 8.
    batch, input_dim, latent_dim = 2, 64, 8
    plan = [32, 32]

    params = init_params(k_init, input_dim, latent_dim, plan,
                         user_input_logvar=-20.0)
    x = jax.random.normal(k_x, (batch, 4, 16), dtype=jnp.float32)

    mean_z, logvar_z = stochastic_recognition_forward(params, x, k_fwd)
    mean_z = jax.block_until_ready(mean_z)
    logvar_z = jax.block_until_ready(logvar_z)

    # Cross-check against the pure-JAX reference (same RNG stream).
    mean_ref, logvar_ref = _ref_forward(params, x, k_fwd)
    assert mean_z.shape == (batch, latent_dim)
    assert logvar_z.shape == (batch, latent_dim)
    assert jnp.allclose(mean_z, mean_ref, atol=1e-4, rtol=1e-4)
    assert jnp.allclose(logvar_z, logvar_ref, atol=1e-4, rtol=1e-4)

    print("KERNEL_OK")
</pallas_src>

<mosaic_0001>
module attributes {stable_mosaic.version = 11 : i64} {
  func.func @kernel(%arg0: memref<2x64xf32, #tpu.memory_space<vmem>>, %arg1: memref<64x32xf32, #tpu.memory_space<vmem>>, %arg2: memref<1x32xf32, #tpu.memory_space<vmem>>, %arg3: memref<1x32xf32, #tpu.memory_space<vmem>>, %arg4: memref<1x32xf32, #tpu.memory_space<vmem>>, %arg5: memref<32x32xf32, #tpu.memory_space<vmem>>, %arg6: memref<1x32xf32, #tpu.memory_space<vmem>>, %arg7: memref<1x32xf32, #tpu.memory_space<vmem>>, %arg8: memref<1x32xf32, #tpu.memory_space<vmem>>, %arg9: memref<32x16xf32, #tpu.memory_space<vmem>>, %arg10: memref<1x16xf32, #tpu.memory_space<vmem>>, %arg11: memref<2x16xf32, #tpu.memory_space<vmem>>) attributes {dimension_semantics = [], scalar_prefetch = 0 : i64, scratch_operands = 0 : i64, tpu.core_type = #tpu.core_type<tc>} {
    %c0 = arith.constant 0 : index
    %c0_0 = arith.constant 0 : index
    %0 = vector.load %arg0[%c0, %c0_0] : memref<2x64xf32, #tpu.memory_space<vmem>>, vector<2x64xf32>
    %c0_1 = arith.constant 0 : index
    %c0_2 = arith.constant 0 : index
    %1 = vector.load %arg1[%c0_1, %c0_2] : memref<64x32xf32, #tpu.memory_space<vmem>>, vector<64x32xf32>
    %cst = arith.constant dense<0.000000e+00> : vector<2x32xf32>
    %2 = tpu.matmul %0, %1, %cst {dimension_numbers = #tpu.dot_dimension_numbers<[1], [0], [0], [1], [0, 0, 1, 1], [], []>} : vector<2x64xf32>, vector<64x32xf32>, vector<2x32xf32> -> vector<2x32xf32>
    %c0_3 = arith.constant 0 : index
    %c0_4 = arith.constant 0 : index
    %3 = vector.load %arg2[%c0_3, %c0_4] : memref<1x32xf32, #tpu.memory_space<vmem>>, vector<1x32xf32>
    %4 = vector.broadcast %3 : vector<1x32xf32> to vector<2x32xf32>
    %5 = arith.addf %2, %4 : vector<2x32xf32>
    %cst_5 = arith.constant dense<0.000000e+00> : vector<2xf32>
    %6 = vector.multi_reduction <add>, %5, %cst_5 [1] : vector<2x32xf32> to vector<2xf32>
    %7 = vector.shape_cast %6 : vector<2xf32> to vector<2x1xf32>
    %cst_6 = arith.constant 3.200000e+01 : f32
    %8 = vector.broadcast %cst_6 : f32 to vector<2x1xf32>
    %9 = arith.divf %7, %8 : vector<2x1xf32>
    %10 = vector.broadcast %9 : vector<2x1xf32> to vector<2x32xf32>
    %11 = arith.subf %5, %10 : vector<2x32xf32>
    %12 = vector.broadcast %9 : vector<2x1xf32> to vector<2x32xf32>
    %13 = arith.subf %5, %12 : vector<2x32xf32>
    %14 = arith.mulf %11, %13 : vector<2x32xf32>
    %cst_7 = arith.constant dense<0.000000e+00> : vector<2xf32>
    %15 = vector.multi_reduction <add>, %14, %cst_7 [1] : vector<2x32xf32> to vector<2xf32>
    %16 = vector.shape_cast %15 : vector<2xf32> to vector<2x1xf32>
    %cst_8 = arith.constant 3.200000e+01 : f32
    %17 = vector.broadcast %cst_8 : f32 to vector<2x1xf32>
    %18 = arith.divf %16, %17 : vector<2x1xf32>
    %19 = vector.broadcast %9 : vector<2x1xf32> to vector<2x32xf32>
    %20 = arith.subf %5, %19 : vector<2x32xf32>
    %cst_9 = arith.constant 9.99999974E-6 : f32
    %21 = vector.broadcast %cst_9 : f32 to vector<2x1xf32>
    %22 = arith.addf %18, %21 : vector<2x1xf32>
    %23 = math.rsqrt %22 : vector<2x1xf32>
    %24 = vector.broadcast %23 : vector<2x1xf32> to vector<2x32xf32>
    %25 = arith.mulf %20, %24 : vector<2x32xf32>
    %c0_10 = arith.constant 0 : index
    %c0_11 = arith.constant 0 : index
    %26 = vector.load %arg3[%c0_10, %c0_11] : memref<1x32xf32, #tpu.memory_space<vmem>>, vector<1x32xf32>
    %27 = vector.broadcast %26 : vector<1x32xf32> to vector<2x32xf32>
    %28 = arith.mulf %25, %27 : vector<2x32xf32>
    %c0_12 = arith.constant 0 : index
    %c0_13 = arith.constant 0 : index
    %29 = vector.load %arg4[%c0_12, %c0_13] : memref<1x32xf32, #tpu.memory_space<vmem>>, vector<1x32xf32>
    %30 = vector.broadcast %29 : vector<1x32xf32> to vector<2x32xf32>
    %31 = arith.addf %28, %30 : vector<2x32xf32>
    %cst_14 = arith.constant 0.000000e+00 : f32
    %32 = vector.broadcast %cst_14 : f32 to vector<2x32xf32>
    %33 = arith.maximumf %31, %32 : vector<2x32xf32>
    %c0_15 = arith.constant 0 : index
    %c0_16 = arith.constant 0 : index
    %34 = vector.load %arg5[%c0_15, %c0_16] : memref<32x32xf32, #tpu.memory_space<vmem>>, vector<32x32xf32>
    %cst_17 = arith.constant dense<0.000000e+00> : vector<2x32xf32>
    %35 = tpu.matmul %33, %34, %cst_17 {dimension_numbers = #tpu.dot_dimension_numbers<[1], [0], [0], [1], [0, 0, 1, 1], [], []>} : vector<2x32xf32>, vector<32x32xf32>, vector<2x32xf32> -> vector<2x32xf32>
    %c0_18 = arith.constant 0 : index
    %c0_19 = arith.constant 0 : index
    %36 = vector.load %arg6[%c0_18, %c0_19] : memref<1x32xf32, #tpu.memory_space<vmem>>, vector<1x32xf32>
    %37 = vector.broadcast %36 : vector<1x32xf32> to vector<2x32xf32>
    %38 = arith.addf %35, %37 : vector<2x32xf32>
    %cst_20 = arith.constant dense<0.000000e+00> : vector<2xf32>
    %39 = vector.multi_reduction <add>, %38, %cst_20 [1] : vector<2x32xf32> to vector<2xf32>
    %40 = vector.shape_cast %39 : vector<2xf32> to vector<2x1xf32>
    %cst_21 = arith.constant 3.200000e+01 : f32
    %41 = vector.broadcast %cst_21 : f32 to vector<2x1xf32>
    %42 = arith.divf %40, %41 : vector<2x1xf32>
    %43 = vector.broadcast %42 : vector<2x1xf32> to vector<2x32xf32>
    %44 = arith.subf %38, %43 : vector<2x32xf32>
    %45 = vector.broadcast %42 : vector<2x1xf32> to vector<2x32xf32>
    %46 = arith.subf %38, %45 : vector<2x32xf32>
    %47 = arith.mulf %44, %46 : vector<2x32xf32>
    %cst_22 = arith.constant dense<0.000000e+00> : vector<2xf32>
    %48 = vector.multi_reduction <add>, %47, %cst_22 [1] : vector<2x32xf32> to vector<2xf32>
    %49 = vector.shape_cast %48 : vector<2xf32> to vector<2x1xf32>
    %cst_23 = arith.constant 3.200000e+01 : f32
    %50 = vector.broadcast %cst_23 : f32 to vector<2x1xf32>
    %51 = arith.divf %49, %50 : vector<2x1xf32>
    %52 = vector.broadcast %42 : vector<2x1xf32> to vector<2x32xf32>
    %53 = arith.subf %38, %52 : vector<2x32xf32>
    %cst_24 = arith.constant 9.99999974E-6 : f32
    %54 = vector.broadcast %cst_24 : f32 to vector<2x1xf32>
    %55 = arith.addf %51, %54 : vector<2x1xf32>
    %56 = math.rsqrt %55 : vector<2x1xf32>
    %57 = vector.broadcast %56 : vector<2x1xf32> to vector<2x32xf32>
    %58 = arith.mulf %53, %57 : vector<2x32xf32>
    %c0_25 = arith.constant 0 : index
    %c0_26 = arith.constant 0 : index
    %59 = vector.load %arg7[%c0_25, %c0_26] : memref<1x32xf32, #tpu.memory_space<vmem>>, vector<1x32xf32>
    %60 = vector.broadcast %59 : vector<1x32xf32> to vector<2x32xf32>
    %61 = arith.mulf %58, %60 : vector<2x32xf32>
    %c0_27 = arith.constant 0 : index
    %c0_28 = arith.constant 0 : index
    %62 = vector.load %arg8[%c0_27, %c0_28] : memref<1x32xf32, #tpu.memory_space<vmem>>, vector<1x32xf32>
    %63 = vector.broadcast %62 : vector<1x32xf32> to vector<2x32xf32>
    %64 = arith.addf %61, %63 : vector<2x32xf32>
    %cst_29 = arith.constant 0.000000e+00 : f32
    %65 = vector.broadcast %cst_29 : f32 to vector<2x32xf32>
    %66 = arith.maximumf %64, %65 : vector<2x32xf32>
    %c0_30 = arith.constant 0 : index
    %c0_31 = arith.constant 0 : index
    %67 = vector.load %arg9[%c0_30, %c0_31] : memref<32x16xf32, #tpu.memory_space<vmem>>, vector<32x16xf32>
    %cst_32 = arith.constant dense<0.000000e+00> : vector<2x16xf32>
    %68 = tpu.matmul %66, %67, %cst_32 {dimension_numbers = #tpu.dot_dimension_numbers<[1], [0], [0], [1], [0, 0, 1, 1], [], []>} : vector<2x32xf32>, vector<32x16xf32>, vector<2x16xf32> -> vector<2x16xf32>
    %c0_33 = arith.constant 0 : index
    %c0_34 = arith.constant 0 : index
    %69 = vector.load %arg10[%c0_33, %c0_34] : memref<1x16xf32, #tpu.memory_space<vmem>>, vector<1x16xf32>
    %70 = vector.broadcast %69 : vector<1x16xf32> to vector<2x16xf32>
    %71 = arith.addf %68, %70 : vector<2x16xf32>
    %c0_35 = arith.constant 0 : index
    %c0_36 = arith.constant 0 : index
    %72 = vector.load %arg11[%c0_35, %c0_36] : memref<2x16xf32, #tpu.memory_space<vmem>>, vector<2x16xf32>
    tpu.vector_store %arg11[%c0_35, %c0_36], %71 {strides = array<i32>} : memref<2x16xf32, #tpu.memory_space<vmem>>, vector<2x16xf32>,
    return
  }
}

</mosaic_0001>

<llo_original>
// kernel: stochastic_recognition_forward.1
$region0: #{stochastic_recognition_forward.1}
  #allocation0 [shape = 'u32[]', space=smem, size = 0x4, offset = 0x4, fixed_abs, tag = 'smem constant byte address 0x4 - core index']
  #allocation1 [shape = 'u32[72,128]{1,0:T(1,128)}', space=vmem, size = 0x9000, scoped, tag = 'internal scratch']
  %s0 = inlined_call_operand.vmem [shape: f32[2,64], index: 0, kind: input, shape index: {}]
  %s1 = inlined_call_operand.vmem [shape: f32[64,32], index: 1, kind: input, shape index: {}]
  %s2 = inlined_call_operand.vmem [shape: f32[1,32], index: 2, kind: input, shape index: {}]
  %s3 = inlined_call_operand.vmem [shape: f32[1,32], index: 3, kind: input, shape index: {}]
  %s4 = inlined_call_operand.vmem [shape: f32[1,32], index: 4, kind: input, shape index: {}]
  %s5 = inlined_call_operand.vmem [shape: f32[32,32], index: 5, kind: input, shape index: {}]
  %s6 = inlined_call_operand.vmem [shape: f32[1,32], index: 6, kind: input, shape index: {}]
  %s7 = inlined_call_operand.vmem [shape: f32[1,32], index: 7, kind: input, shape index: {}]
  %s8 = inlined_call_operand.vmem [shape: f32[1,32], index: 8, kind: input, shape index: {}]
  %s9 = inlined_call_operand.vmem [shape: f32[32,16], index: 9, kind: input, shape index: {}]
  %s10 = inlined_call_operand.vmem [shape: f32[1,16], index: 10, kind: input, shape index: {}]
  %s11 = inlined_call_operand.vmem [shape: f32[2,16], index: 11, kind: output, shape index: {}]
  %s12 = sld [smem:[#allocation0]]
  $region54: #{stochastic_recognition_forward.1} parent=0
    _
  %s14 = ssub.s32 1, %s12
  %s15 = scalar_select 0, %s14, %s12
  // Predicated region
  $region2: #{stochastic_recognition_forward.1} parent=0 // pred_check
    _
  $region3: #{stochastic_recognition_forward.1} parent=0 // pred_check_branch
    %17 = sbr.rel (0) target = $region5
  $region4: #{stochastic_recognition_forward.1} parent=0 // pred_region
    _
  $region5: #{stochastic_recognition_forward.1} parent=0 // pred_fallthru
    _
  // Predicated region
  $region6: #{stochastic_recognition_forward.1} parent=0 // pred_check
    _
  $region7: #{stochastic_recognition_forward.1} parent=0 // pred_check_branch
    %19 = sbr.rel (0) target = $region9
  $region8: #{stochastic_recognition_forward.1} parent=0 // pred_region
    _
  $region9: #{stochastic_recognition_forward.1} parent=0 // pred_fallthru
    _
  // Predicated region
  $region10: #{stochastic_recognition_forward.1} parent=0 // pred_check
    _
  $region11: #{stochastic_recognition_forward.1} parent=0 // pred_check_branch
    %21 = sbr.rel (0) target = $region13
  $region12: #{stochastic_recognition_forward.1} parent=0 // pred_region
    _
  $region13: #{stochastic_recognition_forward.1} parent=0 // pred_fallthru
    _
  // Predicated region
  $region14: #{stochastic_recognition_forward.1} parent=0 // pred_check
    _
  $region15: #{stochastic_recognition_forward.1} parent=0 // pred_check_branch
    %23 = sbr.rel (0) target = $region17
  $region16: #{stochastic_recognition_forward.1} parent=0 // pred_region
    _
  $region17: #{stochastic_recognition_forward.1} parent=0 // pred_fallthru
    _
  // Predicated region
  $region18: #{stochastic_recognition_forward.1} parent=0 // pred_check
    _
  $region19: #{stochastic_recognition_forward.1} parent=0 // pred_check_branch
    %25 = sbr.rel (0) target = $region21
  $region20: #{stochastic_recognition_forward.1} parent=0 // pred_region
    _
  $region21: #{stochastic_recognition_forward.1} parent=0 // pred_fallthru
    _
  // Predicated region
  $region22: #{stochastic_recognition_forward.1} parent=0 // pred_check
    _
  $region23: #{stochastic_recognition_forward.1} parent=0 // pred_check_branch
    %27 = sbr.rel (0) target = $region25
  $region24: #{stochastic_recognition_forward.1} parent=0 // pred_region
    _
  $region25: #{stochastic_recognition_forward.1} parent=0 // pred_fallthru
    _
  // Predicated region
  $region26: #{stochastic_recognition_forward.1} parent=0 // pred_check
    _
  $region27: #{stochastic_recognition_forward.1} parent=0 // pred_check_branch
    %29 = sbr.rel (0) target = $region29
  $region28: #{stochastic_recognition_forward.1} parent=0 // pred_region
    _
  $region29: #{stochastic_recognition_forward.1} parent=0 // pred_fallthru
    _
  // Predicated region
  $region30: #{stochastic_recognition_forward.1} parent=0 // pred_check
    _
  $region31: #{stochastic_recognition_forward.1} parent=0 // pred_check_branch
    %31 = sbr.rel (0) target = $region33
  $region32: #{stochastic_recognition_forward.1} parent=0 // pred_region
    _
  $region33: #{stochastic_recognition_forward.1} parent=0 // pred_fallthru
    _
  // Predicated region
  $region34: #{stochastic_recognition_forward.1} parent=0 // pred_check
    _
  $region35: #{stochastic_recognition_forward.1} parent=0 // pred_check_branch
    %33 = sbr.rel (0) target = $region37
  $region36: #{stochastic_recognition_forward.1} parent=0 // pred_region
    _
  $region37: #{stochastic_recognition_forward.1} parent=0 // pred_fallthru
    _
  // Predicated region
  $region38: #{stochastic_recognition_forward.1} parent=0 // pred_check
    _
  $region39: #{stochastic_recognition_forward.1} parent=0 // pred_check_branch
    %35 = sbr.rel (0) target = $region41
  $region40: #{stochastic_recognition_forward.1} parent=0 // pred_region
    _
  $region41: #{stochastic_recognition_forward.1} parent=0 // pred_fallthru
    _
  // Predicated region
  $region42: #{stochastic_recognition_forward.1} parent=0 // pred_check
    _
  $region43: #{stochastic_recognition_forward.1} parent=0 // pred_check_branch
    %37 = sbr.rel (0) target = $region45
  $region44: #{stochastic_recognition_forward.1} parent=0 // pred_region
    _
  $region45: #{stochastic_recognition_forward.1} parent=0 // pred_fallthru
    _
  %v38 = vld [vmem:[%s0] sm:$0x3]
  %v39 = vld [vmem:[%s1] sm:$0xff]
  %v40 = vld [vmem:[%s1 + $0x8] sm:$0xff]
  %v41 = vld [vmem:[%s1 + $0x10] sm:$0xff]
  %v42 = vld [vmem:[%s1 + $0x18] sm:$0xff]
  %v43 = vld [vmem:[%s1 + $0x20] sm:$0xff]
  %v44 = vld [vmem:[%s1 + $0x28] sm:$0xff]
  %v45 = vld [vmem:[%s1 + $0x30] sm:$0xff]
  %v46 = vld [vmem:[%s1 + $0x38] sm:$0xff]
  %v47 = vld [vmem:[%s2] sm:$0x1]
  %v49 = vperm.slane %v47, 0
  %vm51 = vcmask 523264
  %v53 = vsel %vm51, %v38, 0
  %55 = vmatpush.msra.mxu0 0.0
  %56 = vmatpush.msra.mxu0 0.0
  %57 = vmatpush.msra.mxu0 0.0
  %58 = vmatpush.msra.mxu0 0.0
  %59 = vmatpush.msra.mxu0 0.0
  %60 = vmatpush.msra.mxu0 0.0
  %61 = vmatpush.msra.mxu0 0.0
  %62 = vmatpush.msra.mxu0 0.0
  %63 = vmatpush.msra.mxu0 %v46
  %64 = vmatpush.msra.mxu0 %v45
  %65 = vmatpush.msra.mxu0 %v44
  %66 = vmatpush.msra.mxu0 %v43
  %67 = vmatpush.msra.mxu0 %v42
  %68 = vmatpush.msra.mxu0 %v41
  %69 = vmatpush.msra.mxu0 %v40
  %70 = vmatpush.msra.mxu0 %v39
  %71 = vmatmul.f32.gmra.mxu0 %v53
  %v72 = vpop.f32.mrf.mxu0
  %v73 = vadd.f32 %v49, %v72
  %74 = vdwg.mxu0
  %vm75 = vcmask 254976
  %v76 = vsel %vm75, %v73, 0.0
  %77 = vadd.xlane.f32.xlu0 %v76
  %v78 = vpop.xlane.xlu0 %77
  %v79 = vrcp.pop 32.0
  %v80 = vmul.f32 32.0, %v79
  %v81 = vsub.f32 1.0, %v80
  %v82 = vmul.f32 %v79, %v81
  %v83 = vadd.f32 %v79, %v82
  %vm84 = vweird.f32 %v79
  %v85 = vsel %vm84, %v79, %v83
  %v86 = vmul.f32 %v78, %v85
  %v87 = vsub.f32 %v73, %v86
  %v88 = vmul.f32 %v87, %v87
  %v89 = vsel %vm75, %v88, 0.0
  %90 = vadd.xlane.f32.xlu0 %v89
  %v91 = vpop.xlane.xlu0 %90
  %v92 = vmul.f32 %v91, %v85
  %v93 = vadd.f32 %v92, 1e-05
  %v94 = vrsqrt.pop %v93
  %v95 = vmul.f32 %v94, %v93
  %v96 = vmul.f32 %v95, %v94
  %v97 = vmul.f32 0.5, %v96
  %v98 = vsub.f32 1.5, %v97
  %v99 = vmul.f32 %v94, %v98
  %vm100 = vweird.f32 %v93
  %vm101 = vweird.f32 %v94
  %vm102 = vmor %vm100, %vm101
  %v103 = vsel %vm102, %v94, %v99
  %v104 = vmul.f32 %v87, %v103
  %v105 = vld [vmem:[%s3] sm:$0x1]
  %v107 = vperm.slane %v105, 0
  %v109 = vmul.f32 %v104, %v107
  %v110 = vld [vmem:[%s4] sm:$0x1]
  %v112 = vperm.slane %v110, 0
  %v114 = vadd.f32 %v109, %v112
  %v115 = vmax.f32 %v114, 0.0
  %v116 = vld [vmem:[%s5] sm:$0xff]
  %v117 = vld [vmem:[%s5 + $0x8] sm:$0xff]
  %v118 = vld [vmem:[%s5 + $0x10] sm:$0xff]
  %v119 = vld [vmem:[%s5 + $0x18] sm:$0xff]
  %v120 = vld [vmem:[%s6] sm:$0x1]
  %v122 = vperm.slane %v120, 0
  %vm124 = vcmask 261120
  %v126 = vsel %vm124, %v115, 0
  %128 = vmatpush.msra.mxu0 0.0
  %129 = vmatpush.msra.mxu0 0.0
  %130 = vmatpush.msra.mxu0 0.0
  %131 = vmatpush.msra.mxu0 0.0
  %132 = vmatpush.msra.mxu0 0.0
  %133 = vmatpush.msra.mxu0 0.0
  %134 = vmatpush.msra.mxu0 0.0
  %135 = vmatpush.msra.mxu0 0.0
  %136 = vmatpush.msra.mxu0 0.0
  %137 = vmatpush.msra.mxu0 0.0
  %138 = vmatpush.msra.mxu0 0.0
  %139 = vmatpush.msra.mxu0 0.0
  %140 = vmatpush.msra.mxu0 %v119
  %141 = vmatpush.msra.mxu0 %v118
  %142 = vmatpush.msra.mxu0 %v117
  %143 = vmatpush.msra.mxu0 %v116
  %144 = vmatmul.f32.gmra.mxu0 %v126
  %v145 = vpop.f32.mrf.mxu0
  %v146 = vadd.f32 %v122, %v145
  %147 = vdwg.mxu0
  %v148 = vsel %vm75, %v146, 0.0
  %149 = vadd.xlane.f32.xlu0 %v148
  %v150 = vpop.xlane.xlu0 %149
  %v151 = vmul.f32 %v150, %v85
  %v152 = vsub.f32 %v146, %v151
  %v153 = vmul.f32 %v152, %v152
  %v154 = vsel %vm75, %v153, 0.0
  %155 = vadd.xlane.f32.xlu0 %v154
  %v156 = vpop.xlane.xlu0 %155
  %v157 = vmul.f32 %v156, %v85
  %v158 = vadd.f32 %v157, 1e-05
  %v159 = vrsqrt.pop %v158
  %v160 = vmul.f32 %v159, %v158
  %v161 = vmul.f32 %v160, %v159
  %v162 = vmul.f32 0.5, %v161
  %v163 = vsub.f32 1.5, %v162
  %v164 = vmul.f32 %v159, %v163
  %vm165 = vweird.f32 %v158
  %vm166 = vweird.f32 %v159
  %vm167 = vmor %vm165, %vm166
  %v168 = vsel %vm167, %v159, %v164
  %v169 = vmul.f32 %v152, %v168
  %v170 = vld [vmem:[%s7] sm:$0x1]
  %v172 = vperm.slane %v170, 0
  %v174 = vmul.f32 %v169, %v172
  %v175 = vld [vmem:[%s8] sm:$0x1]
  %v177 = vperm.slane %v175, 0
  %v179 = vadd.f32 %v174, %v177
  %v180 = vmax.f32 %v179, 0.0
  %v181 = vld [vmem:[%s9] sm:$0xff]
  %v182 = vld [vmem:[%s9 + $0x8] sm:$0xff]
  %v183 = vld [vmem:[%s9 + $0x10] sm:$0xff]
  %v184 = vld [vmem:[%s9 + $0x18] sm:$0xff]
  %v185 = vld [vmem:[%s10] sm:$0x1]
  %v187 = vperm.slane %v185, 0
  %v190 = vsel %vm124, %v180, 0
  %192 = vmatpush.msra.mxu0 0.0
  %193 = vmatpush.msra.mxu0 0.0
  %194 = vmatpush.msra.mxu0 0.0
  %195 = vmatpush.msra.mxu0 0.0
  %196 = vmatpush.msra.mxu0 0.0
  %197 = vmatpush.msra.mxu0 0.0
  %198 = vmatpush.msra.mxu0 0.0
  %199 = vmatpush.msra.mxu0 0.0
  %200 = vmatpush.msra.mxu0 0.0
  %201 = vmatpush.msra.mxu0 0.0
  %202 = vmatpush.msra.mxu0 0.0
  %203 = vmatpush.msra.mxu0 0.0
  %204 = vmatpush.msra.mxu0 %v184
  %205 = vmatpush.msra.mxu0 %v183
  %206 = vmatpush.msra.mxu0 %v182
  %207 = vmatpush.msra.mxu0 %v181
  %208 = vmatmul.f32.gmra.mxu0 %v190
  %v209 = vpop.f32.mrf.mxu0
  %v210 = vadd.f32 %v187, %v209
  %211 = vdwg.mxu0
  %vm212 = vcmask 123904
  %213 = vst.msk [vmem:[%s11] sm:$0x3] %vm212, %v210
  // Predicated region
  $region46: #{stochastic_recognition_forward.1} parent=0 // pred_check
    _
  $region47: #{stochastic_recognition_forward.1} parent=0 // pred_check_branch
    %215 = sbr.rel (0) target = $region49
  $region48: #{stochastic_recognition_forward.1} parent=0 // pred_region
    _
  $region49: #{stochastic_recognition_forward.1} parent=0 // pred_fallthru
    _
  // Predicated region
  $region50: #{stochastic_recognition_forward.1} parent=0 // pred_check
    _
  $region51: #{stochastic_recognition_forward.1} parent=0 // pred_check_branch
    %217 = sbr.rel (0) target = $region53
  $region52: #{stochastic_recognition_forward.1} parent=0 // pred_region
    _
  $region53: #{stochastic_recognition_forward.1} parent=0 // pred_fallthru
    _

</llo_original>
